<compile_context>
chip_gen: v7x
topology: tpu7x:2x2x1
jax: 0.10.0
libtpu: 0.0.40
codegen_flags: <defaults>
</compile_context>

<pallas_src>
import jax
import jax.numpy as jnp
from jax import lax
from jax.experimental import pallas as pl
from jax.experimental.pallas import tpu as pltpu


def _round_up(x: int, m: int) -> int:
    return -(-x // m) * m


def _make_kernel(T: int, B: int):
    """Build the RNN kernel as a closure over the static (T, padded-B) shape."""

    def kernel(x_ref, wih_ref, whh_ref, b_ref, wfc_ref, bfc_ref, out_ref):
        """Hoisted-GEMM RNN + vreg-resident hidden states + deferred Linear head.

        x_ref   : (T*B, I)   time-major flattened inputs (B already padded to 8k)
        wih_ref : (I, H)     input->hidden weights (pre-transposed)
        whh_ref : (H, H)     hidden->hidden weights (pre-transposed)
        b_ref   : (1, H)     combined RNN bias (b_ih + b_hh)
        wfc_ref : (H, Op)    output head weights (pre-transposed, O padded to 128)
        bfc_ref : (1, Op)    output head bias (padded)
        out_ref : (T*B, Op)  time-major flattened predictions (lane-dense)
        """
        w_hh = whh_ref[...]

        # (1) Input projection as ONE MXU GEMM, bias folded in -- entirely off
        #     the serial dependency chain.
        pre = (
            jnp.dot(x_ref[...], wih_ref[...], preferred_element_type=jnp.float32)
            + b_ref[...]
        )  # (T*B, H)

        # (2) Peel step 0: h0 == 0 so h0 @ W_hh vanishes.
        h = jnp.tanh(pre[0:B, :])  # (B, H)
        hs = [h]

        # (3) Fully unrolled recurrence with static, sublane-aligned slices.
        #     Per-step critical-path work: one (B,H)x(H,H) MXU matmul + EUP tanh.
        #     Hidden states stay vreg-resident (no VMEM scratch traffic).
        for t in range(1, T):
            h = jnp.tanh(
                pre[t * B:(t + 1) * B, :]
                + jnp.dot(h, w_hh, preferred_element_type=jnp.float32)
            )
            hs.append(h)

        # (4) Deferred output head: one GEMM over all timesteps + one bulk,
        #     lane-dense, unmasked store.
        hs_all = jnp.concatenate(hs, axis=0)  # (T*B, H), vreg/VMEM-value, no reload
        y = (
            jnp.dot(hs_all, wfc_ref[...], preferred_element_type=jnp.float32)
            + bfc_ref[...]
        )  # (T*B, Op)
        out_ref[...] = y.astype(out_ref.dtype)

    return kernel


def rnn_neural_predictor(x, w_ih, w_hh, b_ih, b_hh, w_fc, b_fc):
    """Forward pass matching RNNNeuralPredictor.forward.

    x     : (B, T, I)  float32, batch-first (PyTorch convention)
    w_ih  : (H, I)     PyTorch nn.RNN weight_ih_l0
    w_hh  : (H, H)     PyTorch nn.RNN weight_hh_l0
    b_ih  : (H,)       PyTorch nn.RNN bias_ih_l0
    b_hh  : (H,)       PyTorch nn.RNN bias_hh_l0
    w_fc  : (O, H)     PyTorch nn.Linear weight
    b_fc  : (O,)       PyTorch nn.Linear bias
    returns: (B, T, O) float32
    """
    B, T, I = x.shape
    H = w_hh.shape[0]
    O = w_fc.shape[0]

    # Pad batch to a full sublane group (>= 8) and the output feature dim to a
    # full 128-lane tile: aligned slices inside the kernel, dense unmasked
    # final store. Padded rows/cols are sliced away afterwards.
    Bp = max(8, _round_up(B, 8))
    Op = _round_up(O, 128)

    x_p = jnp.pad(x.astype(jnp.float32), ((0, Bp - B), (0, 0), (0, 0)))  # (Bp, T, I)
    # Time-major flatten (T*Bp, I).
    # TODO(synk): with a T-chunked grid, fold this transpose into the x
    # BlockSpec index_map instead of materializing a time-major copy in HBM.
    x_flat = jnp.transpose(x_p, (1, 0, 2)).reshape(T * Bp, I)

    wih_t = jnp.transpose(w_ih).astype(jnp.float32)                         # (I, H)
    whh_t = jnp.transpose(w_hh).astype(jnp.float32)                         # (H, H)
    b_rnn = (b_ih + b_hh).reshape(1, H).astype(jnp.float32)                 # (1, H)
    wfc_t = jnp.pad(jnp.transpose(w_fc).astype(jnp.float32),
                    ((0, 0), (0, Op - O)))                                  # (H, Op)
    bfc = jnp.pad(b_fc.astype(jnp.float32), (0, Op - O)).reshape(1, Op)     # (1, Op)

    flops = 2 * T * Bp * (I * H + H * H + H * Op)
    bytes_accessed = 4 * (T * Bp * I + I * H + H * H + H + H * Op + Op + T * Bp * Op)

    out_flat = pl.pallas_call(
        _make_kernel(T, Bp),
        out_shape=jax.ShapeDtypeStruct((T * Bp, Op), jnp.float32),
        in_specs=[pl.BlockSpec(memory_space=pltpu.MemorySpace.VMEM)] * 6,
        out_specs=pl.BlockSpec(memory_space=pltpu.MemorySpace.VMEM),
        cost_estimate=pl.CostEstimate(
            flops=flops, transcendentals=T * Bp * H, bytes_accessed=bytes_accessed
        ),
    )(x_flat, wih_t, whh_t, b_rnn, wfc_t, bfc)

    # Back to PyTorch batch-first layout; drop batch / output padding.
    out = jnp.transpose(out_flat.reshape(T, Bp, Op), (1, 0, 2))  # (Bp, T, Op)
    return out[:B, :, :O]


def _reference_forward(x, w_ih, w_hh, b_ih, b_hh, w_fc, b_fc):
    """Pure-JAX reference replicating PyTorch nn.RNN + nn.Linear semantics."""
    B, T, I = x.shape
    H = w_hh.shape[0]
    hp = lax.Precision.HIGHEST  # full f32 matmuls so the comparison is exact-ish

    def step(h, x_t):
        h_new = jnp.tanh(
            jnp.dot(x_t, w_ih.T, precision=hp) + b_ih
            + jnp.dot(h, w_hh.T, precision=hp) + b_hh
        )
        return h_new, h_new

    h0 = jnp.zeros((B, H), jnp.float32)
    _, hs = lax.scan(step, h0, jnp.transpose(x, (1, 0, 2)))  # hs: (T, B, H)
    rnn_out = jnp.transpose(hs, (1, 0, 2))                   # (B, T, H)
    return jnp.dot(rnn_out, w_fc.T, precision=hp) + b_fc


if __name__ == "__main__":
    # Small shapes consistent with the module's forward:
    # x: (batch, seq_len, input_size); hidden_size=32; output_size=16 neurons.
    B, T, I, H, O = 2, 8, 4, 32, 16

    key = jax.random.PRNGKey(0)
    kx, k1, k2, k3, k4, k5, k6 = jax.random.split(key, 7)

    # Deterministic parameter init (PyTorch-style uniform(-1/sqrt(H), 1/sqrt(H))).
    s_rnn = 1.0 / jnp.sqrt(jnp.float32(H))
    s_fc = 1.0 / jnp.sqrt(jnp.float32(H))
    w_ih = jax.random.uniform(k1, (H, I), jnp.float32, -s_rnn, s_rnn)
    w_hh = jax.random.uniform(k2, (H, H), jnp.float32, -s_rnn, s_rnn)
    b_ih = jax.random.uniform(k3, (H,), jnp.float32, -s_rnn, s_rnn)
    b_hh = jax.random.uniform(k4, (H,), jnp.float32, -s_rnn, s_rnn)
    w_fc = jax.random.uniform(k5, (O, H), jnp.float32, -s_fc, s_fc)
    b_fc = jax.random.uniform(k6, (O,), jnp.float32, -s_fc, s_fc)

    x = jax.random.normal(kx, (B, T, I), jnp.float32)

    out = rnn_neural_predictor(x, w_ih, w_hh, b_ih, b_hh, w_fc, b_fc)
    out = jax.block_until_ready(out)

    ref = _reference_forward(x, w_ih, w_hh, b_ih, b_hh, w_fc, b_fc)
    assert out.shape == (B, T, O), out.shape
    max_err = float(jnp.max(jnp.abs(out - ref)))
    assert jnp.allclose(out, ref, atol=1e-3, rtol=1e-3), max_err

    print("KERNEL_OK")
</pallas_src>

<mosaic_0001>
module attributes {stable_mosaic.version = 11 : i64} {
  func.func @kernel(%arg0: memref<64x4xf32, #tpu.memory_space<vmem>>, %arg1: memref<4x32xf32, #tpu.memory_space<vmem>>, %arg2: memref<32x32xf32, #tpu.memory_space<vmem>>, %arg3: memref<1x32xf32, #tpu.memory_space<vmem>>, %arg4: memref<32x128xf32, #tpu.memory_space<vmem>>, %arg5: memref<1x128xf32, #tpu.memory_space<vmem>>, %arg6: memref<64x128xf32, #tpu.memory_space<vmem>>) attributes {dimension_semantics = [], scalar_prefetch = 0 : i64, scratch_operands = 0 : i64, tpu.core_type = #tpu.core_type<tc>} {
    %c0 = arith.constant 0 : index
    %c0_0 = arith.constant 0 : index
    %0 = vector.load %arg2[%c0, %c0_0] : memref<32x32xf32, #tpu.memory_space<vmem>>, vector<32x32xf32>
    %c0_1 = arith.constant 0 : index
    %c0_2 = arith.constant 0 : index
    %1 = vector.load %arg0[%c0_1, %c0_2] : memref<64x4xf32, #tpu.memory_space<vmem>>, vector<64x4xf32>
    %c0_3 = arith.constant 0 : index
    %c0_4 = arith.constant 0 : index
    %2 = vector.load %arg1[%c0_3, %c0_4] : memref<4x32xf32, #tpu.memory_space<vmem>>, vector<4x32xf32>
    %cst = arith.constant dense<0.000000e+00> : vector<64x32xf32>
    %3 = tpu.matmul %1, %2, %cst {dimension_numbers = #tpu.dot_dimension_numbers<[1], [0], [0], [1], [0, 0, 1, 1], [], []>} : vector<64x4xf32>, vector<4x32xf32>, vector<64x32xf32> -> vector<64x32xf32>
    %c0_5 = arith.constant 0 : index
    %c0_6 = arith.constant 0 : index
    %4 = vector.load %arg3[%c0_5, %c0_6] : memref<1x32xf32, #tpu.memory_space<vmem>>, vector<1x32xf32>
    %5 = vector.broadcast %4 : vector<1x32xf32> to vector<64x32xf32>
    %6 = arith.addf %3, %5 : vector<64x32xf32>
    %7 = vector.extract_strided_slice %6 {offsets = [0, 0], sizes = [8, 32], strides = [1, 1]} : vector<64x32xf32> to vector<8x32xf32>
    %8 = math.tanh %7 : vector<8x32xf32>
    %9 = vector.extract_strided_slice %6 {offsets = [8, 0], sizes = [8, 32], strides = [1, 1]} : vector<64x32xf32> to vector<8x32xf32>
    %cst_7 = arith.constant dense<0.000000e+00> : vector<8x32xf32>
    %10 = tpu.matmul %8, %0, %cst_7 {dimension_numbers = #tpu.dot_dimension_numbers<[1], [0], [0], [1], [0, 0, 1, 1], [], []>} : vector<8x32xf32>, vector<32x32xf32>, vector<8x32xf32> -> vector<8x32xf32>
    %11 = arith.addf %9, %10 : vector<8x32xf32>
    %12 = math.tanh %11 : vector<8x32xf32>
    %13 = vector.extract_strided_slice %6 {offsets = [16, 0], sizes = [8, 32], strides = [1, 1]} : vector<64x32xf32> to vector<8x32xf32>
    %cst_8 = arith.constant dense<0.000000e+00> : vector<8x32xf32>
    %14 = tpu.matmul %12, %0, %cst_8 {dimension_numbers = #tpu.dot_dimension_numbers<[1], [0], [0], [1], [0, 0, 1, 1], [], []>} : vector<8x32xf32>, vector<32x32xf32>, vector<8x32xf32> -> vector<8x32xf32>
    %15 = arith.addf %13, %14 : vector<8x32xf32>
    %16 = math.tanh %15 : vector<8x32xf32>
    %17 = vector.extract_strided_slice %6 {offsets = [24, 0], sizes = [8, 32], strides = [1, 1]} : vector<64x32xf32> to vector<8x32xf32>
    %cst_9 = arith.constant dense<0.000000e+00> : vector<8x32xf32>
    %18 = tpu.matmul %16, %0, %cst_9 {dimension_numbers = #tpu.dot_dimension_numbers<[1], [0], [0], [1], [0, 0, 1, 1], [], []>} : vector<8x32xf32>, vector<32x32xf32>, vector<8x32xf32> -> vector<8x32xf32>
    %19 = arith.addf %17, %18 : vector<8x32xf32>
    %20 = math.tanh %19 : vector<8x32xf32>
    %21 = vector.extract_strided_slice %6 {offsets = [32, 0], sizes = [8, 32], strides = [1, 1]} : vector<64x32xf32> to vector<8x32xf32>
    %cst_10 = arith.constant dense<0.000000e+00> : vector<8x32xf32>
    %22 = tpu.matmul %20, %0, %cst_10 {dimension_numbers = #tpu.dot_dimension_numbers<[1], [0], [0], [1], [0, 0, 1, 1], [], []>} : vector<8x32xf32>, vector<32x32xf32>, vector<8x32xf32> -> vector<8x32xf32>
    %23 = arith.addf %21, %22 : vector<8x32xf32>
    %24 = math.tanh %23 : vector<8x32xf32>
    %25 = vector.extract_strided_slice %6 {offsets = [40, 0], sizes = [8, 32], strides = [1, 1]} : vector<64x32xf32> to vector<8x32xf32>
    %cst_11 = arith.constant dense<0.000000e+00> : vector<8x32xf32>
    %26 = tpu.matmul %24, %0, %cst_11 {dimension_numbers = #tpu.dot_dimension_numbers<[1], [0], [0], [1], [0, 0, 1, 1], [], []>} : vector<8x32xf32>, vector<32x32xf32>, vector<8x32xf32> -> vector<8x32xf32>
    %27 = arith.addf %25, %26 : vector<8x32xf32>
    %28 = math.tanh %27 : vector<8x32xf32>
    %29 = vector.extract_strided_slice %6 {offsets = [48, 0], sizes = [8, 32], strides = [1, 1]} : vector<64x32xf32> to vector<8x32xf32>
    %cst_12 = arith.constant dense<0.000000e+00> : vector<8x32xf32>
    %30 = tpu.matmul %28, %0, %cst_12 {dimension_numbers = #tpu.dot_dimension_numbers<[1], [0], [0], [1], [0, 0, 1, 1], [], []>} : vector<8x32xf32>, vector<32x32xf32>, vector<8x32xf32> -> vector<8x32xf32>
    %31 = arith.addf %29, %30 : vector<8x32xf32>
    %32 = math.tanh %31 : vector<8x32xf32>
    %33 = vector.extract_strided_slice %6 {offsets = [56, 0], sizes = [8, 32], strides = [1, 1]} : vector<64x32xf32> to vector<8x32xf32>
    %cst_13 = arith.constant dense<0.000000e+00> : vector<8x32xf32>
    %34 = tpu.matmul %32, %0, %cst_13 {dimension_numbers = #tpu.dot_dimension_numbers<[1], [0], [0], [1], [0, 0, 1, 1], [], []>} : vector<8x32xf32>, vector<32x32xf32>, vector<8x32xf32> -> vector<8x32xf32>
    %35 = arith.addf %33, %34 : vector<8x32xf32>
    %36 = math.tanh %35 : vector<8x32xf32>
    %37 = tpu.concatenate %8, %12, %16, %20, %24, %28, %32, %36 in 0 : vector<8x32xf32>, vector<8x32xf32>, vector<8x32xf32>, vector<8x32xf32>, vector<8x32xf32>, vector<8x32xf32>, vector<8x32xf32>, vector<8x32xf32> -> vector<64x32xf32>
    %c0_14 = arith.constant 0 : index
    %c0_15 = arith.constant 0 : index
    %38 = vector.load %arg4[%c0_14, %c0_15] : memref<32x128xf32, #tpu.memory_space<vmem>>, vector<32x128xf32>
    %cst_16 = arith.constant dense<0.000000e+00> : vector<64x128xf32>
    %39 = tpu.matmul %37, %38, %cst_16 {dimension_numbers = #tpu.dot_dimension_numbers<[1], [0], [0], [1], [0, 0, 1, 1], [], []>} : vector<64x32xf32>, vector<32x128xf32>, vector<64x128xf32> -> vector<64x128xf32>
    %c0_17 = arith.constant 0 : index
    %c0_18 = arith.constant 0 : index
    %40 = vector.load %arg5[%c0_17, %c0_18] : memref<1x128xf32, #tpu.memory_space<vmem>>, vector<1x128xf32>
    %41 = vector.broadcast %40 : vector<1x128xf32> to vector<64x128xf32>
    %42 = arith.addf %39, %41 : vector<64x128xf32>
    %c0_19 = arith.constant 0 : index
    %c0_20 = arith.constant 0 : index
    %43 = vector.load %arg6[%c0_19, %c0_20] : memref<64x128xf32, #tpu.memory_space<vmem>>, vector<64x128xf32>
    tpu.vector_store %arg6[%c0_19, %c0_20], %42 {strides = array<i32>} : memref<64x128xf32, #tpu.memory_space<vmem>>, vector<64x128xf32>,
    return
  }
}

</mosaic_0001>

<llo_original>
// kernel: tpu_custom_call.1
$region0: #{tpu_custom_call.1}
  #allocation0 [shape = 'u32[]', space=smem, size = 0x4, offset = 0x4, fixed_abs, tag = 'smem constant byte address 0x4 - core index']
  #allocation1 [shape = 'u32[144,128]{1,0:T(1,128)}', space=vmem, size = 0x12000, scoped, tag = 'internal scratch']
  %s0 = inlined_call_operand.vmem [shape: f32[64,4], index: 0, kind: input, shape index: {}]
  %s1 = inlined_call_operand.vmem [shape: f32[4,32], index: 1, kind: input, shape index: {}]
  %s2 = inlined_call_operand.vmem [shape: f32[32,32], index: 2, kind: input, shape index: {}]
  %s3 = inlined_call_operand.vmem [shape: f32[1,32], index: 3, kind: input, shape index: {}]
  %s4 = inlined_call_operand.vmem [shape: f32[32,128], index: 4, kind: input, shape index: {}]
  %s5 = inlined_call_operand.vmem [shape: f32[1,128], index: 5, kind: input, shape index: {}]
  %s6 = inlined_call_operand.hbm [shape: f32[64,128], index: 6, kind: output, shape index: {}]
  %s7 = sld [smem:[#allocation0]]
  $region34: #{tpu_custom_call.1} parent=0
    _
  %s9 = ssub.s32 1, %s7
  %s10 = scalar_select 0, %s9, %s7
  $region1: #{tpu_custom_call.1} parent=0
    #allocation2 [shape = 'u8[32768]{0}', space=vmem, size = 0x8000, scoped, tag = 'output window, operand 0, single buffered']
    #allocation3 [shape = 's32[1]{0}', space=sflag, size = 0x4, scoped, tag = 'scoped memory for tpu_custom_call.1']
    %11 = vsyncpa [#allocation3], 0
    // Predicated region
    $region2: #{tpu_custom_call.1} parent=1 // pred_check
      _
    $region3: #{tpu_custom_call.1} parent=1 // pred_check_branch
      %13 = sbr.rel (0) target = $region5
    $region4: #{tpu_custom_call.1} parent=1 // pred_region
      _
    $region5: #{tpu_custom_call.1} parent=1 // pred_fallthru
      _
    // Predicated region
    $region6: #{tpu_custom_call.1} parent=1 // pred_check
      _
    $region7: #{tpu_custom_call.1} parent=1 // pred_check_branch
      %15 = sbr.rel (0) target = $region9
    $region8: #{tpu_custom_call.1} parent=1 // pred_region
      _
    $region9: #{tpu_custom_call.1} parent=1 // pred_fallthru
      _
    // Predicated region
    $region10: #{tpu_custom_call.1} parent=1 // pred_check
      _
    $region11: #{tpu_custom_call.1} parent=1 // pred_check_branch
      %17 = sbr.rel (0) target = $region13
    $region12: #{tpu_custom_call.1} parent=1 // pred_region
      _
    $region13: #{tpu_custom_call.1} parent=1 // pred_fallthru
      _
    // Predicated region
    $region14: #{tpu_custom_call.1} parent=1 // pred_check
      _
    $region15: #{tpu_custom_call.1} parent=1 // pred_check_branch
      %19 = sbr.rel (0) target = $region17
    $region16: #{tpu_custom_call.1} parent=1 // pred_region
      _
    $region17: #{tpu_custom_call.1} parent=1 // pred_fallthru
      _
    // Predicated region
    $region18: #{tpu_custom_call.1} parent=1 // pred_check
      _
    $region19: #{tpu_custom_call.1} parent=1 // pred_check_branch
      %21 = sbr.rel (0) target = $region21
    $region20: #{tpu_custom_call.1} parent=1 // pred_region
      _
    $region21: #{tpu_custom_call.1} parent=1 // pred_fallthru
      _
    // Predicated region
    $region22: #{tpu_custom_call.1} parent=1 // pred_check
      _
    $region23: #{tpu_custom_call.1} parent=1 // pred_check_branch
      %23 = sbr.rel (0) target = $region25
    $region24: #{tpu_custom_call.1} parent=1 // pred_region
      _
    $region25: #{tpu_custom_call.1} parent=1 // pred_fallthru
      _
    %v24 = vld [vmem:[%s2] sm:$0xff]
    %v25 = vld [vmem:[%s2 + $0x8] sm:$0xff]
    %v26 = vld [vmem:[%s2 + $0x10] sm:$0xff]
    %v27 = vld [vmem:[%s2 + $0x18] sm:$0xff]
    %v28 = vld [vmem:[%s0] sm:$0xff]
    %v29 = vld [vmem:[%s0 + $0x8] sm:$0xff]
    %v30 = vld [vmem:[%s0 + $0x10] sm:$0xff]
    %v31 = vld [vmem:[%s0 + $0x18] sm:$0xff]
    %v32 = vld [vmem:[%s0 + $0x20] sm:$0xff]
    %v33 = vld [vmem:[%s0 + $0x28] sm:$0xff]
    %v34 = vld [vmem:[%s0 + $0x30] sm:$0xff]
    %v35 = vld [vmem:[%s0 + $0x38] sm:$0xff]
    %v36 = vld [vmem:[%s1] sm:$0xf]
    %v37 = vld [vmem:[%s3] sm:$0x1]
    %v39 = vlaneseq
    %v40 = vshrl.u32 %v39, 7
    %v41 = vsub.s32 0, %v40
    %v42 = vrot.slane %v37, %v41
    %vm44 = vcmask 31744
    %v46 = vsel %vm44, %v28, 0
    %v49 = vsel %vm44, %v29, 0
    %v52 = vsel %vm44, %v30, 0
    %v55 = vsel %vm44, %v31, 0
    %v58 = vsel %vm44, %v32, 0
    %v61 = vsel %vm44, %v33, 0
    %v64 = vsel %vm44, %v34, 0
    %v67 = vsel %vm44, %v35, 0
    %vm69 = vcmask 1043456
    %v71 = vsel %vm69, %v36, 0
    %73 = vmatprep.subr.mxu0 0.0
    %74 = vmatpush1.msra.mxu0 %v71
    %75 = vmatprep.subr.mxu0 0.0
    %76 = vmatpush1.msra.mxu0 0.0
    %77 = vmatprep.subr.mxu0 0.0
    %78 = vmatpush1.msra.mxu0 0.0
    %79 = vmatprep.subr.mxu0 0.0
    %80 = vmatpush1.msra.mxu0 0.0
    %81 = vmatprep.subr.mxu0 0.0
    %82 = vmatpush1.msra.mxu0 0.0
    %83 = vmatprep.subr.mxu0 0.0
    %84 = vmatpush1.msra.mxu0 0.0
    %85 = vmatprep.subr.mxu0 0.0
    %86 = vmatpush1.msra.mxu0 0.0
    %87 = vmatprep.subr.mxu0 0.0
    %88 = vmatpush1.msra.mxu0 0.0
    %89 = vmatprep.subr.mxu0 0.0
    %90 = vmatpush1.msra.mxu0 0.0
    %91 = vmatprep.subr.mxu0 0.0
    %92 = vmatpush1.msra.mxu0 0.0
    %93 = vmatprep.subr.mxu0 0.0
    %94 = vmatpush1.msra.mxu0 0.0
    %95 = vmatprep.subr.mxu0 0.0
    %96 = vmatpush1.msra.mxu0 0.0
    %97 = vmatprep.subr.mxu0 0.0
    %98 = vmatpush1.msra.mxu0 0.0
    %99 = vmatprep.subr.mxu0 0.0
    %100 = vmatpush1.msra.mxu0 0.0
    %101 = vmatprep.subr.mxu0 0.0
    %102 = vmatpush1.msra.mxu0 0.0
    %103 = vmatprep.subr.mxu0 0.0
    %104 = vmatpush1.msra.mxu0 0.0
    %105 = vmatprep.subr.mxu0 0.0
    %106 = vmatpush1.msra.mxu0 0.0
    %107 = vmatprep.subr.mxu0 0.0
    %108 = vmatpush1.msra.mxu0 0.0
    %109 = vmatprep.subr.mxu0 0.0
    %110 = vmatpush1.msra.mxu0 0.0
    %111 = vmatprep.subr.mxu0 0.0
    %112 = vmatpush1.msra.mxu0 0.0
    %113 = vmatprep.subr.mxu0 0.0
    %114 = vmatpush1.msra.mxu0 0.0
    %115 = vmatprep.subr.mxu0 0.0
    %116 = vmatpush1.msra.mxu0 0.0
    %117 = vmatprep.subr.mxu0 0.0
    %118 = vmatpush1.msra.mxu0 0.0
    %119 = vmatprep.subr.mxu0 0.0
    %120 = vmatpush1.msra.mxu0 0.0
    %121 = vmatprep.subr.mxu0 0.0
    %122 = vmatpush1.msra.mxu0 0.0
    %123 = vmatprep.subr.mxu0 0.0
    %124 = vmatpush1.msra.mxu0 0.0
    %125 = vmatprep.subr.mxu0 0.0
    %126 = vmatpush1.msra.mxu0 0.0
    %127 = vmatprep.subr.mxu0 0.0
    %128 = vmatpush1.msra.mxu0 0.0
    %129 = vmatprep.subr.mxu0 0.0
    %130 = vmatpush1.msra.mxu0 0.0
    %131 = vmatprep.subr.mxu0 0.0
    %132 = vmatpush1.msra.mxu0 0.0
    %133 = vmatprep.subr.mxu0 0.0
    %134 = vmatpush1.msra.mxu0 0.0
    %135 = vmatprep.subr.mxu0 0.0
    %136 = vmatpush1.msra.mxu0 0.0
    %137 = vmatprep.mubr.f32.mxu0 0.0
    %138 = vmatmul.mubr.f32.gmra.mrb[0].mxu0 %v46
    %v139 = vpop.f32.mrb[0].mxu0
    %v140 = vadd.f32 %v42, %v139
    %v141 = vpop.f32.mrb[0].mxu0
    %142 = vmatprep.mubr.f32.mxu0 0.0
    %143 = vmatmul.mubr.f32.gmra.mrb[0].mxu0 %v49
    %v144 = vpop.f32.mrb[0].mxu0
    %v145 = vadd.f32 %v42, %v144
    %v146 = vpop.f32.mrb[0].mxu0
    %147 = vmatprep.mubr.f32.mxu0 0.0
    %148 = vmatmul.mubr.f32.gmra.mrb[0].mxu0 %v52
    %v149 = vpop.f32.mrb[0].mxu0
    %v150 = vadd.f32 %v42, %v149
    %v151 = vpop.f32.mrb[0].mxu0
    %152 = vmatprep.mubr.f32.mxu0 0.0
    %153 = vmatmul.mubr.f32.gmra.mrb[0].mxu0 %v55
    %v154 = vpop.f32.mrb[0].mxu0
    %v155 = vadd.f32 %v42, %v154
    %v156 = vpop.f32.mrb[0].mxu0
    %157 = vmatprep.mubr.f32.mxu0 0.0
    %158 = vmatmul.mubr.f32.gmra.mrb[0].mxu0 %v58
    %v159 = vpop.f32.mrb[0].mxu0
    %v160 = vadd.f32 %v42, %v159
    %v161 = vpop.f32.mrb[0].mxu0
    %162 = vmatprep.mubr.f32.mxu0 0.0
    %163 = vmatmul.mubr.f32.gmra.mrb[0].mxu0 %v61
    %v164 = vpop.f32.mrb[0].mxu0
    %v165 = vadd.f32 %v42, %v164
    %v166 = vpop.f32.mrb[0].mxu0
    %167 = vmatprep.mubr.f32.mxu0 0.0
    %168 = vmatmul.mubr.f32.gmra.mrb[0].mxu0 %v64
    %v169 = vpop.f32.mrb[0].mxu0
    %v170 = vadd.f32 %v42, %v169
    %v171 = vpop.f32.mrb[0].mxu0
    %172 = vmatprep.mubr.f32.mxu0 0.0
    %173 = vmatmul.mubr.f32.gmra.mrb[0].mxu0 %v67
    %v174 = vpop.f32.mrb[0].mxu0
    %v175 = vadd.f32 %v42, %v174
    %v176 = vpop.f32.mrb[0].mxu0
    %177 = vdwg.mxu0
    %v178 = vtanh.pop %v140
    %vm179 = vcmask 261120
    %v181 = vsel %vm179, %v178, 0
    %183 = vmatprep.subr.mxu0 0.0
    %184 = vmatpush1.msra.mxu0 %v24
    %185 = vmatprep.subr.mxu0 0.0
    %186 = vmatpush1.msra.mxu0 %v25
    %187 = vmatprep.subr.mxu0 0.0
    %188 = vmatpush1.msra.mxu0 %v26
    %189 = vmatprep.subr.mxu0 0.0
    %190 = vmatpush1.msra.mxu0 %v27
    %191 = vmatprep.subr.mxu0 0.0
    %192 = vmatpush1.msra.mxu0 0.0
    %193 = vmatprep.subr.mxu0 0.0
    %194 = vmatpush1.msra.mxu0 0.0
    %195 = vmatprep.subr.mxu0 0.0
    %196 = vmatpush1.msra.mxu0 0.0
    %197 = vmatprep.subr.mxu0 0.0
    %198 = vmatpush1.msra.mxu0 0.0
    %199 = vmatprep.subr.mxu0 0.0
    %200 = vmatpush1.msra.mxu0 0.0
    %201 = vmatprep.subr.mxu0 0.0
    %202 = vmatpush1.msra.mxu0 0.0
    %203 = vmatprep.subr.mxu0 0.0
    %204 = vmatpush1.msra.mxu0 0.0
    %205 = vmatprep.subr.mxu0 0.0
    %206 = vmatpush1.msra.mxu0 0.0
    %207 = vmatprep.subr.mxu0 0.0
    %208 = vmatpush1.msra.mxu0 0.0
    %209 = vmatprep.subr.mxu0 0.0
    %210 = vmatpush1.msra.mxu0 0.0
    %211 = vmatprep.subr.mxu0 0.0
    %212 = vmatpush1.msra.mxu0 0.0
    %213 = vmatprep.subr.mxu0 0.0
    %214 = vmatpush1.msra.mxu0 0.0
    %215 = vmatprep.subr.mxu0 0.0
    %216 = vmatpush1.msra.mxu0 0.0
    %217 = vmatprep.subr.mxu0 0.0
    %218 = vmatpush1.msra.mxu0 0.0
    %219 = vmatprep.subr.mxu0 0.0
    %220 = vmatpush1.msra.mxu0 0.0
    %221 = vmatprep.subr.mxu0 0.0
    %222 = vmatpush1.msra.mxu0 0.0
    %223 = vmatprep.subr.mxu0 0.0
    %224 = vmatpush1.msra.mxu0 0.0
    %225 = vmatprep.subr.mxu0 0.0
    %226 = vmatpush1.msra.mxu0 0.0
    %227 = vmatprep.subr.mxu0 0.0
    %228 = vmatpush1.msra.mxu0 0.0
    %229 = vmatprep.subr.mxu0 0.0
    %230 = vmatpush1.msra.mxu0 0.0
    %231 = vmatprep.subr.mxu0 0.0
    %232 = vmatpush1.msra.mxu0 0.0
    %233 = vmatprep.subr.mxu0 0.0
    %234 = vmatpush1.msra.mxu0 0.0
    %235 = vmatprep.subr.mxu0 0.0
    %236 = vmatpush1.msra.mxu0 0.0
    %237 = vmatprep.subr.mxu0 0.0
    %238 = vmatpush1.msra.mxu0 0.0
    %239 = vmatprep.subr.mxu0 0.0
    %240 = vmatpush1.msra.mxu0 0.0
    %241 = vmatprep.subr.mxu0 0.0
    %242 = vmatpush1.msra.mxu0 0.0
    %243 = vmatprep.subr.mxu0 0.0
    %244 = vmatpush1.msra.mxu0 0.0
    %245 = vmatprep.subr.mxu0 0.0
    %246 = vmatpush1.msra.mxu0 0.0
    %247 = vmatprep.mubr.f32.mxu0 0.0
    %248 = vmatmul.mubr.f32.gmra.mrb[0].mxu0 %v181
    %v249 = vpop.f32.mrb[0].mxu0
    %v250 = vadd.f32 0.0, %v249
    %v251 = vpop.f32.mrb[0].mxu0
    %252 = vdwg.mxu0
    %v253 = vadd.f32 %v145, %v250
    %v254 = vtanh.pop %v253
    %v256 = vsel %vm179, %v254, 0
    %258 = vmatprep.subr.mxu0 0.0
    %259 = vmatpush1.msra.mxu0 %v24
    %260 = vmatprep.subr.mxu0 0.0
    %261 = vmatpush1.msra.mxu0 %v25
    %262 = vmatprep.subr.mxu0 0.0
    %263 = vmatpush1.msra.mxu0 %v26
    %264 = vmatprep.subr.mxu0 0.0
    %265 = vmatpush1.msra.mxu0 %v27
    %266 = vmatprep.subr.mxu0 0.0
    %267 = vmatpush1.msra.mxu0 0.0
    %268 = vmatprep.subr.mxu0 0.0
    %269 = vmatpush1.msra.mxu0 0.0
    %270 = vmatprep.subr.mxu0 0.0
    %271 = vmatpush1.msra.mxu0 0.0
    %272 = vmatprep.subr.mxu0 0.0
    %273 = vmatpush1.msra.mxu0 0.0
    %274 = vmatprep.subr.mxu0 0.0
    %275 = vmatpush1.msra.mxu0 0.0
    %276 = vmatprep.subr.mxu0 0.0
    %277 = vmatpush1.msra.mxu0 0.0
    %278 = vmatprep.subr.mxu0 0.0
    %279 = vmatpush1.msra.mxu0 0.0
    %280 = vmatprep.subr.mxu0 0.0
    %281 = vmatpush1.msra.mxu0 0.0
    %282 = vmatprep.subr.mxu0 0.0
    %283 = vmatpush1.msra.mxu0 0.0
    %284 = vmatprep.subr.mxu0 0.0
    %285 = vmatpush1.msra.mxu0 0.0
    %286 = vmatprep.subr.mxu0 0.0
    %287 = vmatpush1.msra.mxu0 0.0
    %288 = vmatprep.subr.mxu0 0.0
    %289 = vmatpush1.msra.mxu0 0.0
    %290 = vmatprep.subr.mxu0 0.0
    %291 = vmatpush1.msra.mxu0 0.0
    %292 = vmatprep.subr.mxu0 0.0
    %293 = vmatpush1.msra.mxu0 0.0
    %294 = vmatprep.subr.mxu0 0.0
    %295 = vmatpush1.msra.mxu0 0.0
    %296 = vmatprep.subr.mxu0 0.0
    %297 = vmatpush1.msra.mxu0 0.0
    %298 = vmatprep.subr.mxu0 0.0
    %299 = vmatpush1.msra.mxu0 0.0
    %300 = vmatprep.subr.mxu0 0.0
    %301 = vmatpush1.msra.mxu0 0.0
    %302 = vmatprep.subr.mxu0 0.0
    %303 = vmatpush1.msra.mxu0 0.0
    %304 = vmatprep.subr.mxu0 0.0
    %305 = vmatpush1.msra.mxu0 0.0
    %306 = vmatprep.subr.mxu0 0.0
    %307 = vmatpush1.msra.mxu0 0.0
    %308 = vmatprep.subr.mxu0 0.0
    %309 = vmatpush1.msra.mxu0 0.0
    %310 = vmatprep.subr.mxu0 0.0
    %311 = vmatpush1.msra.mxu0 0.0
    %312 = vmatprep.subr.mxu0 0.0
    %313 = vmatpush1.msra.mxu0 0.0
    %314 = vmatprep.subr.mxu0 0.0
    %315 = vmatpush1.msra.mxu0 0.0
    %316 = vmatprep.subr.mxu0 0.0
    %317 = vmatpush1.msra.mxu0 0.0
    %318 = vmatprep.subr.mxu0 0.0
    %319 = vmatpush1.msra.mxu0 0.0
    %320 = vmatprep.subr.mxu0 0.0
    %321 = vmatpush1.msra.mxu0 0.0
    %322 = vmatprep.mubr.f32.mxu0 0.0
    %323 = vmatmul.mubr.f32.gmra.mrb[0].mxu0 %v256
    %v324 = vpop.f32.mrb[0].mxu0
    %v325 = vadd.f32 0.0, %v324
    %v326 = vpop.f32.mrb[0].mxu0
    %327 = vdwg.mxu0
    %v328 = vadd.f32 %v150, %v325
    %v329 = vtanh.pop %v328
    %v331 = vsel %vm179, %v329, 0
    %333 = vmatprep.subr.mxu0 0.0
    %334 = vmatpush1.msra.mxu0 %v24
    %335 = vmatprep.subr.mxu0 0.0
    %336 = vmatpush1.msra.mxu0 %v25
    %337 = vmatprep.subr.mxu0 0.0
    %338 = vmatpush1.msra.mxu0 %v26
    %339 = vmatprep.subr.mxu0 0.0
    %340 = vmatpush1.msra.mxu0 %v27
    %341 = vmatprep.subr.mxu0 0.0
    %342 = vmatpush1.msra.mxu0 0.0
    %343 = vmatprep.subr.mxu0 0.0
    %344 = vmatpush1.msra.mxu0 0.0
    %345 = vmatprep.subr.mxu0 0.0
    %346 = vmatpush1.msra.mxu0 0.0
    %347 = vmatprep.subr.mxu0 0.0
    %348 = vmatpush1.msra.mxu0 0.0
    %349 = vmatprep.subr.mxu0 0.0
    %350 = vmatpush1.msra.mxu0 0.0
    %351 = vmatprep.subr.mxu0 0.0
    %352 = vmatpush1.msra.mxu0 0.0
    %353 = vmatprep.subr.mxu0 0.0
    %354 = vmatpush1.msra.mxu0 0.0
    %355 = vmatprep.subr.mxu0 0.0
    %356 = vmatpush1.msra.mxu0 0.0
    %357 = vmatprep.subr.mxu0 0.0
    %358 = vmatpush1.msra.mxu0 0.0
    %359 = vmatprep.subr.mxu0 0.0
    %360 = vmatpush1.msra.mxu0 0.0
    %361 = vmatprep.subr.mxu0 0.0
    %362 = vmatpush1.msra.mxu0 0.0
    %363 = vmatprep.subr.mxu0 0.0
    %364 = vmatpush1.msra.mxu0 0.0
    %365 = vmatprep.subr.mxu0 0.0
    %366 = vmatpush1.msra.mxu0 0.0
    %367 = vmatprep.subr.mxu0 0.0
    %368 = vmatpush1.msra.mxu0 0.0
    %369 = vmatprep.subr.mxu0 0.0
    %370 = vmatpush1.msra.mxu0 0.0
    %371 = vmatprep.subr.mxu0 0.0
    %372 = vmatpush1.msra.mxu0 0.0
    %373 = vmatprep.subr.mxu0 0.0
    %374 = vmatpush1.msra.mxu0 0.0
    %375 = vmatprep.subr.mxu0 0.0
    %376 = vmatpush1.msra.mxu0 0.0
    %377 = vmatprep.subr.mxu0 0.0
    %378 = vmatpush1.msra.mxu0 0.0
    %379 = vmatprep.subr.mxu0 0.0
    %380 = vmatpush1.msra.mxu0 0.0
    %381 = vmatprep.subr.mxu0 0.0
    %382 = vmatpush1.msra.mxu0 0.0
    %383 = vmatprep.subr.mxu0 0.0
    %384 = vmatpush1.msra.mxu0 0.0
    %385 = vmatprep.subr.mxu0 0.0
    %386 = vmatpush1.msra.mxu0 0.0
    %387 = vmatprep.subr.mxu0 0.0
    %388 = vmatpush1.msra.mxu0 0.0
    %389 = vmatprep.subr.mxu0 0.0
    %390 = vmatpush1.msra.mxu0 0.0
    %391 = vmatprep.subr.mxu0 0.0
    %392 = vmatpush1.msra.mxu0 0.0
    %393 = vmatprep.subr.mxu0 0.0
    %394 = vmatpush1.msra.mxu0 0.0
    %395 = vmatprep.subr.mxu0 0.0
    %396 = vmatpush1.msra.mxu0 0.0
    %397 = vmatprep.mubr.f32.mxu0 0.0
    %398 = vmatmul.mubr.f32.gmra.mrb[0].mxu0 %v331
    %v399 = vpop.f32.mrb[0].mxu0
    %v400 = vadd.f32 0.0, %v399
    %v401 = vpop.f32.mrb[0].mxu0
    %402 = vdwg.mxu0
    %v403 = vadd.f32 %v155, %v400
    %v404 = vtanh.pop %v403
    %v406 = vsel %vm179, %v404, 0
    %408 = vmatprep.subr.mxu0 0.0
    %409 = vmatpush1.msra.mxu0 %v24
    %410 = vmatprep.subr.mxu0 0.0
    %411 = vmatpush1.msra.mxu0 %v25
    %412 = vmatprep.subr.mxu0 0.0
    %413 = vmatpush1.msra.mxu0 %v26
    %414 = vmatprep.subr.mxu0 0.0
    %415 = vmatpush1.msra.mxu0 %v27
    %416 = vmatprep.subr.mxu0 0.0
    %417 = vmatpush1.msra.mxu0 0.0
    %418 = vmatprep.subr.mxu0 0.0
    %419 = vmatpush1.msra.mxu0 0.0
    %420 = vmatprep.subr.mxu0 0.0
    %421 = vmatpush1.msra.mxu0 0.0
    %422 = vmatprep.subr.mxu0 0.0
    %423 = vmatpush1.msra.mxu0 0.0
    %424 = vmatprep.subr.mxu0 0.0
    %425 = vmatpush1.msra.mxu0 0.0
    %426 = vmatprep.subr.mxu0 0.0
    %427 = vmatpush1.msra.mxu0 0.0
    %428 = vmatprep.subr.mxu0 0.0
    %429 = vmatpush1.msra.mxu0 0.0
    %430 = vmatprep.subr.mxu0 0.0
    %431 = vmatpush1.msra.mxu0 0.0
    %432 = vmatprep.subr.mxu0 0.0
    %433 = vmatpush1.msra.mxu0 0.0
    %434 = vmatprep.subr.mxu0 0.0
    %435 = vmatpush1.msra.mxu0 0.0
    %436 = vmatprep.subr.mxu0 0.0
    %437 = vmatpush1.msra.mxu0 0.0
    %438 = vmatprep.subr.mxu0 0.0
    %439 = vmatpush1.msra.mxu0 0.0
    %440 = vmatprep.subr.mxu0 0.0
    %441 = vmatpush1.msra.mxu0 0.0
    %442 = vmatprep.subr.mxu0 0.0
    %443 = vmatpush1.msra.mxu0 0.0
    %444 = vmatprep.subr.mxu0 0.0
    %445 = vmatpush1.msra.mxu0 0.0
    %446 = vmatprep.subr.mxu0 0.0
    %447 = vmatpush1.msra.mxu0 0.0
    %448 = vmatprep.subr.mxu0 0.0
    %449 = vmatpush1.msra.mxu0 0.0
    %450 = vmatprep.subr.mxu0 0.0
    %451 = vmatpush1.msra.mxu0 0.0
    %452 = vmatprep.subr.mxu0 0.0
    %453 = vmatpush1.msra.mxu0 0.0
    %454 = vmatprep.subr.mxu0 0.0
    %455 = vmatpush1.msra.mxu0 0.0
    %456 = vmatprep.subr.mxu0 0.0
    %457 = vmatpush1.msra.mxu0 0.0
    %458 = vmatprep.subr.mxu0 0.0
    %459 = vmatpush1.msra.mxu0 0.0
    %460 = vmatprep.subr.mxu0 0.0
    %461 = vmatpush1.msra.mxu0 0.0
    %462 = vmatprep.subr.mxu0 0.0
    %463 = vmatpush1.msra.mxu0 0.0
    %464 = vmatprep.subr.mxu0 0.0
    %465 = vmatpush1.msra.mxu0 0.0
    %466 = vmatprep.subr.mxu0 0.0
    %467 = vmatpush1.msra.mxu0 0.0
    %468 = vmatprep.subr.mxu0 0.0
    %469 = vmatpush1.msra.mxu0 0.0
    %470 = vmatprep.subr.mxu0 0.0
    %471 = vmatpush1.msra.mxu0 0.0
    %472 = vmatprep.mubr.f32.mxu0 0.0
    %473 = vmatmul.mubr.f32.gmra.mrb[0].mxu0 %v406
    %v474 = vpop.f32.mrb[0].mxu0
    %v475 = vadd.f32 0.0, %v474
    %v476 = vpop.f32.mrb[0].mxu0
    %477 = vdwg.mxu0
    %v478 = vadd.f32 %v160, %v475
    %v479 = vtanh.pop %v478
    %v481 = vsel %vm179, %v479, 0
    %483 = vmatprep.subr.mxu0 0.0
    %484 = vmatpush1.msra.mxu0 %v24
    %485 = vmatprep.subr.mxu0 0.0
    %486 = vmatpush1.msra.mxu0 %v25
    %487 = vmatprep.subr.mxu0 0.0
    %488 = vmatpush1.msra.mxu0 %v26
    %489 = vmatprep.subr.mxu0 0.0
    %490 = vmatpush1.msra.mxu0 %v27
    %491 = vmatprep.subr.mxu0 0.0
    %492 = vmatpush1.msra.mxu0 0.0
    %493 = vmatprep.subr.mxu0 0.0
    %494 = vmatpush1.msra.mxu0 0.0
    %495 = vmatprep.subr.mxu0 0.0
    %496 = vmatpush1.msra.mxu0 0.0
    %497 = vmatprep.subr.mxu0 0.0
    %498 = vmatpush1.msra.mxu0 0.0
    %499 = vmatprep.subr.mxu0 0.0
    %500 = vmatpush1.msra.mxu0 0.0
    %501 = vmatprep.subr.mxu0 0.0
    %502 = vmatpush1.msra.mxu0 0.0
    %503 = vmatprep.subr.mxu0 0.0
    %504 = vmatpush1.msra.mxu0 0.0
    %505 = vmatprep.subr.mxu0 0.0
    %506 = vmatpush1.msra.mxu0 0.0
    %507 = vmatprep.subr.mxu0 0.0
    %508 = vmatpush1.msra.mxu0 0.0
    %509 = vmatprep.subr.mxu0 0.0
    %510 = vmatpush1.msra.mxu0 0.0
    %511 = vmatprep.subr.mxu0 0.0
    %512 = vmatpush1.msra.mxu0 0.0
    %513 = vmatprep.subr.mxu0 0.0
    %514 = vmatpush1.msra.mxu0 0.0
    %515 = vmatprep.subr.mxu0 0.0
    %516 = vmatpush1.msra.mxu0 0.0
    %517 = vmatprep.subr.mxu0 0.0
    %518 = vmatpush1.msra.mxu0 0.0
    %519 = vmatprep.subr.mxu0 0.0
    %520 = vmatpush1.msra.mxu0 0.0
    %521 = vmatprep.subr.mxu0 0.0
    %522 = vmatpush1.msra.mxu0 0.0
    %523 = vmatprep.subr.mxu0 0.0
    %524 = vmatpush1.msra.mxu0 0.0
    %525 = vmatprep.subr.mxu0 0.0
    %526 = vmatpush1.msra.mxu0 0.0
    %527 = vmatprep.subr.mxu0 0.0
    %528 = vmatpush1.msra.mxu0 0.0
    %529 = vmatprep.subr.mxu0 0.0
    %530 = vmatpush1.msra.mxu0 0.0
    %531 = vmatprep.subr.mxu0 0.0
    %532 = vmatpush1.msra.mxu0 0.0
    %533 = vmatprep.subr.mxu0 0.0
    %534 = vmatpush1.msra.mxu0 0.0
    %535 = vmatprep.subr.mxu0 0.0
    %536 = vmatpush1.msra.mxu0 0.0
    %537 = vmatprep.subr.mxu0 0.0
    %538 = vmatpush1.msra.mxu0 0.0
    %539 = vmatprep.subr.mxu0 0.0
    %540 = vmatpush1.msra.mxu0 0.0
    %541 = vmatprep.subr.mxu0 0.0
    %542 = vmatpush1.msra.mxu0 0.0
    %543 = vmatprep.subr.mxu0 0.0
    %544 = vmatpush1.msra.mxu0 0.0
    %545 = vmatprep.subr.mxu0 0.0
    %546 = vmatpush1.msra.mxu0 0.0
    %547 = vmatprep.mubr.f32.mxu0 0.0
    %548 = vmatmul.mubr.f32.gmra.mrb[0].mxu0 %v481
    %v549 = vpop.f32.mrb[0].mxu0
    %v550 = vadd.f32 0.0, %v549
    %v551 = vpop.f32.mrb[0].mxu0
    %552 = vdwg.mxu0
    %v553 = vadd.f32 %v165, %v550
    %v554 = vtanh.pop %v553
    %v556 = vsel %vm179, %v554, 0
    %558 = vmatprep.subr.mxu0 0.0
    %559 = vmatpush1.msra.mxu0 %v24
    %560 = vmatprep.subr.mxu0 0.0
    %561 = vmatpush1.msra.mxu0 %v25
    %562 = vmatprep.subr.mxu0 0.0
    %563 = vmatpush1.msra.mxu0 %v26
    %564 = vmatprep.subr.mxu0 0.0
    %565 = vmatpush1.msra.mxu0 %v27
    %566 = vmatprep.subr.mxu0 0.0
    %567 = vmatpush1.msra.mxu0 0.0
    %568 = vmatprep.subr.mxu0 0.0
    %569 = vmatpush1.msra.mxu0 0.0
    %570 = vmatprep.subr.mxu0 0.0
    %571 = vmatpush1.msra.mxu0 0.0
    %572 = vmatprep.subr.mxu0 0.0
    %573 = vmatpush1.msra.mxu0 0.0
    %574 = vmatprep.subr.mxu0 0.0
    %575 = vmatpush1.msra.mxu0 0.0
    %576 = vmatprep.subr.mxu0 0.0
    %577 = vmatpush1.msra.mxu0 0.0
    %578 = vmatprep.subr.mxu0 0.0
    %579 = vmatpush1.msra.mxu0 0.0
    %580 = vmatprep.subr.mxu0 0.0
    %581 = vmatpush1.msra.mxu0 0.0
    %582 = vmatprep.subr.mxu0 0.0
    %583 = vmatpush1.msra.mxu0 0.0
    %584 = vmatprep.subr.mxu0 0.0
    %585 = vmatpush1.msra.mxu0 0.0
    %586 = vmatprep.subr.mxu0 0.0
    %587 = vmatpush1.msra.mxu0 0.0
    %588 = vmatprep.subr.mxu0 0.0
    %589 = vmatpush1.msra.mxu0 0.0
    %590 = vmatprep.subr.mxu0 0.0
    %591 = vmatpush1.msra.mxu0 0.0
    %592 = vmatprep.subr.mxu0 0.0
    %593 = vmatpush1.msra.mxu0 0.0
    %594 = vmatprep.subr.mxu0 0.0
    %595 = vmatpush1.msra.mxu0 0.0
    %596 = vmatprep.subr.mxu0 0.0
    %597 = vmatpush1.msra.mxu0 0.0
    %598 = vmatprep.subr.mxu0 0.0
    %599 = vmatpush1.msra.mxu0 0.0
    %600 = vmatprep.subr.mxu0 0.0
    %601 = vmatpush1.msra.mxu0 0.0
    %602 = vmatprep.subr.mxu0 0.0
    %603 = vmatpush1.msra.mxu0 0.0
    %604 = vmatprep.subr.mxu0 0.0
    %605 = vmatpush1.msra.mxu0 0.0
    %606 = vmatprep.subr.mxu0 0.0
    %607 = vmatpush1.msra.mxu0 0.0
    %608 = vmatprep.subr.mxu0 0.0
    %609 = vmatpush1.msra.mxu0 0.0
    %610 = vmatprep.subr.mxu0 0.0
    %611 = vmatpush1.msra.mxu0 0.0
    %612 = vmatprep.subr.mxu0 0.0
    %613 = vmatpush1.msra.mxu0 0.0
    %614 = vmatprep.subr.mxu0 0.0
    %615 = vmatpush1.msra.mxu0 0.0
    %616 = vmatprep.subr.mxu0 0.0
    %617 = vmatpush1.msra.mxu0 0.0
    %618 = vmatprep.subr.mxu0 0.0
    %619 = vmatpush1.msra.mxu0 0.0
    %620 = vmatprep.subr.mxu0 0.0
    %621 = vmatpush1.msra.mxu0 0.0
    %622 = vmatprep.mubr.f32.mxu0 0.0
    %623 = vmatmul.mubr.f32.gmra.mrb[0].mxu0 %v556
    %v624 = vpop.f32.mrb[0].mxu0
    %v625 = vadd.f32 0.0, %v624
    %v626 = vpop.f32.mrb[0].mxu0
    %627 = vdwg.mxu0
    %v628 = vadd.f32 %v170, %v625
    %v629 = vtanh.pop %v628
    %v631 = vsel %vm179, %v629, 0
    %633 = vmatprep.subr.mxu0 0.0
    %634 = vmatpush1.msra.mxu0 %v24
    %635 = vmatprep.subr.mxu0 0.0
    %636 = vmatpush1.msra.mxu0 %v25
    %637 = vmatprep.subr.mxu0 0.0
    %638 = vmatpush1.msra.mxu0 %v26
    %639 = vmatprep.subr.mxu0 0.0
    %640 = vmatpush1.msra.mxu0 %v27
    %641 = vmatprep.subr.mxu0 0.0
    %642 = vmatpush1.msra.mxu0 0.0
    %643 = vmatprep.subr.mxu0 0.0
    %644 = vmatpush1.msra.mxu0 0.0
    %645 = vmatprep.subr.mxu0 0.0
    %646 = vmatpush1.msra.mxu0 0.0
    %647 = vmatprep.subr.mxu0 0.0
    %648 = vmatpush1.msra.mxu0 0.0
    %649 = vmatprep.subr.mxu0 0.0
    %650 = vmatpush1.msra.mxu0 0.0
    %651 = vmatprep.subr.mxu0 0.0
    %652 = vmatpush1.msra.mxu0 0.0
    %653 = vmatprep.subr.mxu0 0.0
    %654 = vmatpush1.msra.mxu0 0.0
    %655 = vmatprep.subr.mxu0 0.0
    %656 = vmatpush1.msra.mxu0 0.0
    %657 = vmatprep.subr.mxu0 0.0
    %658 = vmatpush1.msra.mxu0 0.0
    %659 = vmatprep.subr.mxu0 0.0
    %660 = vmatpush1.msra.mxu0 0.0
    %661 = vmatprep.subr.mxu0 0.0
    %662 = vmatpush1.msra.mxu0 0.0
    %663 = vmatprep.subr.mxu0 0.0
    %664 = vmatpush1.msra.mxu0 0.0
    %665 = vmatprep.subr.mxu0 0.0
    %666 = vmatpush1.msra.mxu0 0.0
    %667 = vmatprep.subr.mxu0 0.0
    %668 = vmatpush1.msra.mxu0 0.0
    %669 = vmatprep.subr.mxu0 0.0
    %670 = vmatpush1.msra.mxu0 0.0
    %671 = vmatprep.subr.mxu0 0.0
    %672 = vmatpush1.msra.mxu0 0.0
    %673 = vmatprep.subr.mxu0 0.0
    %674 = vmatpush1.msra.mxu0 0.0
    %675 = vmatprep.subr.mxu0 0.0
    %676 = vmatpush1.msra.mxu0 0.0
    %677 = vmatprep.subr.mxu0 0.0
    %678 = vmatpush1.msra.mxu0 0.0
    %679 = vmatprep.subr.mxu0 0.0
    %680 = vmatpush1.msra.mxu0 0.0
    %681 = vmatprep.subr.mxu0 0.0
    %682 = vmatpush1.msra.mxu0 0.0
    %683 = vmatprep.subr.mxu0 0.0
    %684 = vmatpush1.msra.mxu0 0.0
    %685 = vmatprep.subr.mxu0 0.0
    %686 = vmatpush1.msra.mxu0 0.0
    %687 = vmatprep.subr.mxu0 0.0
    %688 = vmatpush1.msra.mxu0 0.0
    %689 = vmatprep.subr.mxu0 0.0
    %690 = vmatpush1.msra.mxu0 0.0
    %691 = vmatprep.subr.mxu0 0.0
    %692 = vmatpush1.msra.mxu0 0.0
    %693 = vmatprep.subr.mxu0 0.0
    %694 = vmatpush1.msra.mxu0 0.0
    %695 = vmatprep.subr.mxu0 0.0
    %696 = vmatpush1.msra.mxu0 0.0
    %697 = vmatprep.mubr.f32.mxu0 0.0
    %698 = vmatmul.mubr.f32.gmra.mrb[0].mxu0 %v631
    %v699 = vpop.f32.mrb[0].mxu0
    %v700 = vadd.f32 0.0, %v699
    %v701 = vpop.f32.mrb[0].mxu0
    %702 = vdwg.mxu0
    %v703 = vadd.f32 %v175, %v700
    %v704 = vtanh.pop %v703
    %v705 = vld [vmem:[%s4] sm:$0xff]
    %v706 = vld [vmem:[%s4 + $0x8] sm:$0xff]
    %v707 = vld [vmem:[%s4 + $0x10] sm:$0xff]
    %v708 = vld [vmem:[%s4 + $0x18] sm:$0xff]
    %v709 = vld [vmem:[%s5] sm:$0x1]
    %v711 = vlaneseq
    %v712 = vshrl.u32 %v711, 7
    %v713 = vsub.s32 0, %v712
    %v714 = vrot.slane %v709, %v713
    %v717 = vsel %vm179, %v704, 0
    %719 = vmatprep.subr.mxu0 0.0
    %720 = vmatpush1.msra.mxu0 %v705
    %721 = vmatprep.subr.mxu0 0.0
    %722 = vmatpush1.msra.mxu0 %v706
    %723 = vmatprep.subr.mxu0 0.0
    %724 = vmatpush1.msra.mxu0 %v707
    %725 = vmatprep.subr.mxu0 0.0
    %726 = vmatpush1.msra.mxu0 %v708
    %727 = vmatprep.subr.mxu0 0.0
    %728 = vmatpush1.msra.mxu0 0.0
    %729 = vmatprep.subr.mxu0 0.0
    %730 = vmatpush1.msra.mxu0 0.0
    %731 = vmatprep.subr.mxu0 0.0
    %732 = vmatpush1.msra.mxu0 0.0
    %733 = vmatprep.subr.mxu0 0.0
    %734 = vmatpush1.msra.mxu0 0.0
    %735 = vmatprep.subr.mxu0 0.0
    %736 = vmatpush1.msra.mxu0 0.0
    %737 = vmatprep.subr.mxu0 0.0
    %738 = vmatpush1.msra.mxu0 0.0
    %739 = vmatprep.subr.mxu0 0.0
    %740 = vmatpush1.msra.mxu0 0.0
    %741 = vmatprep.subr.mxu0 0.0
    %742 = vmatpush1.msra.mxu0 0.0
    %743 = vmatprep.subr.mxu0 0.0
    %744 = vmatpush1.msra.mxu0 0.0
    %745 = vmatprep.subr.mxu0 0.0
    %746 = vmatpush1.msra.mxu0 0.0
    %747 = vmatprep.subr.mxu0 0.0
    %748 = vmatpush1.msra.mxu0 0.0
    %749 = vmatprep.subr.mxu0 0.0
    %750 = vmatpush1.msra.mxu0 0.0
    %751 = vmatprep.subr.mxu0 0.0
    %752 = vmatpush1.msra.mxu0 0.0
    %753 = vmatprep.subr.mxu0 0.0
    %754 = vmatpush1.msra.mxu0 0.0
    %755 = vmatprep.subr.mxu0 0.0
    %756 = vmatpush1.msra.mxu0 0.0
    %757 = vmatprep.subr.mxu0 0.0
    %758 = vmatpush1.msra.mxu0 0.0
    %759 = vmatprep.subr.mxu0 0.0
    %760 = vmatpush1.msra.mxu0 0.0
    %761 = vmatprep.subr.mxu0 0.0
    %762 = vmatpush1.msra.mxu0 0.0
    %763 = vmatprep.subr.mxu0 0.0
    %764 = vmatpush1.msra.mxu0 0.0
    %765 = vmatprep.subr.mxu0 0.0
    %766 = vmatpush1.msra.mxu0 0.0
    %767 = vmatprep.subr.mxu0 0.0
    %768 = vmatpush1.msra.mxu0 0.0
    %769 = vmatprep.subr.mxu0 0.0
    %770 = vmatpush1.msra.mxu0 0.0
    %771 = vmatprep.subr.mxu0 0.0
    %772 = vmatpush1.msra.mxu0 0.0
    %773 = vmatprep.subr.mxu0 0.0
    %774 = vmatpush1.msra.mxu0 0.0
    %775 = vmatprep.subr.mxu0 0.0
    %776 = vmatpush1.msra.mxu0 0.0
    %777 = vmatprep.subr.mxu0 0.0
    %778 = vmatpush1.msra.mxu0 0.0
    %779 = vmatprep.subr.mxu0 0.0
    %780 = vmatpush1.msra.mxu0 0.0
    %781 = vmatprep.subr.mxu0 0.0
    %782 = vmatpush1.msra.mxu0 0.0
    %783 = vmatprep.mubr.f32.mxu0 0.0
    %784 = vmatmul.mubr.f32.gmra.mrb[0].mxu0 %v181
    %v785 = vpop.f32.mrb[0].mxu0
    %v786 = vadd.f32 %v714, %v785
    %v787 = vpop.f32.mrb[0].mxu0
    %788 = vmatprep.mubr.f32.mxu0 0.0
    %789 = vmatmul.mubr.f32.gmra.mrb[0].mxu0 %v256
    %v790 = vpop.f32.mrb[0].mxu0
    %v791 = vadd.f32 %v714, %v790
    %v792 = vpop.f32.mrb[0].mxu0
    %793 = vmatprep.mubr.f32.mxu0 0.0
    %794 = vmatmul.mubr.f32.gmra.mrb[0].mxu0 %v331
    %v795 = vpop.f32.mrb[0].mxu0
    %v796 = vadd.f32 %v714, %v795
    %v797 = vpop.f32.mrb[0].mxu0
    %798 = vmatprep.mubr.f32.mxu0 0.0
    %799 = vmatmul.mubr.f32.gmra.mrb[0].mxu0 %v406
    %v800 = vpop.f32.mrb[0].mxu0
    %v801 = vadd.f32 %v714, %v800
    %v802 = vpop.f32.mrb[0].mxu0
    %803 = vmatprep.mubr.f32.mxu0 0.0
    %804 = vmatmul.mubr.f32.gmra.mrb[0].mxu0 %v481
    %v805 = vpop.f32.mrb[0].mxu0
    %v806 = vadd.f32 %v714, %v805
    %v807 = vpop.f32.mrb[0].mxu0
    %808 = vmatprep.mubr.f32.mxu0 0.0
    %809 = vmatmul.mubr.f32.gmra.mrb[0].mxu0 %v556
    %v810 = vpop.f32.mrb[0].mxu0
    %v811 = vadd.f32 %v714, %v810
    %v812 = vpop.f32.mrb[0].mxu0
    %813 = vmatprep.mubr.f32.mxu0 0.0
    %814 = vmatmul.mubr.f32.gmra.mrb[0].mxu0 %v631
    %v815 = vpop.f32.mrb[0].mxu0
    %v816 = vadd.f32 %v714, %v815
    %v817 = vpop.f32.mrb[0].mxu0
    %818 = vmatprep.mubr.f32.mxu0 0.0
    %819 = vmatmul.mubr.f32.gmra.mrb[0].mxu0 %v717
    %v820 = vpop.f32.mrb[0].mxu0
    %v821 = vadd.f32 %v714, %v820
    %v822 = vpop.f32.mrb[0].mxu0
    %823 = vdwg.mxu0
    %824 = vst [vmem:[#allocation2] sm:$0xff] %v786
    %825 = vst [vmem:[#allocation2 + $0x8] sm:$0xff] %v791
    %826 = vst [vmem:[#allocation2 + $0x10] sm:$0xff] %v796
    %827 = vst [vmem:[#allocation2 + $0x18] sm:$0xff] %v801
    %828 = vst [vmem:[#allocation2 + $0x20] sm:$0xff] %v806
    %829 = vst [vmem:[#allocation2 + $0x28] sm:$0xff] %v811
    %830 = vst [vmem:[#allocation2 + $0x30] sm:$0xff] %v816
    %831 = vst [vmem:[#allocation2 + $0x38] sm:$0xff] %v821
    // Predicated region
    $region26: #{tpu_custom_call.1} parent=1 // pred_check
      _
    $region27: #{tpu_custom_call.1} parent=1 // pred_check_branch
      %833 = sbr.rel (0) target = $region29
    $region28: #{tpu_custom_call.1} parent=1 // pred_region
      %s835 = ssub.s32 1024, 1024
      %836 = vsyncadd [#allocation3], %s835
      %s837 = sshll.u32 [#allocation2], 4
      %s838 = int_to_ptr.vmem [resolvable:$true] %s837
      %843 = dma.vmem_to_hbm [thread:$0]  %s838, 1024, %s6, [#allocation3], 128, 128, 8
    $region29: #{tpu_custom_call.1} parent=1 // pred_fallthru
      _
    // Predicated region
    $region30: #{tpu_custom_call.1} parent=1 // pred_check
      _
    $region31: #{tpu_custom_call.1} parent=1 // pred_check_branch
      %845 = sbr.rel (0) target = $region33
    $region32: #{tpu_custom_call.1} parent=1 // pred_region
      %846 = dma.done [#allocation3], 1024
    $region33: #{tpu_custom_call.1} parent=1 // pred_fallthru
      _
    %847 = vsyncpa [#allocation3], 1

</llo_original>
